<compile_context>
chip_gen: v7x
topology: tpu7x:2x2x1
jax: 0.10.0
libtpu: 0.0.40
codegen_flags: <defaults>
</compile_context>

<pallas_src>
import functools
import math

import numpy as np
import jax
import jax.numpy as jnp
from jax.experimental import pallas as pl
from jax.experimental.pallas import tpu as pltpu


# --------------------------------------------------------------------------
# small helpers
# --------------------------------------------------------------------------

def _cdiv(a, b):
    return -(-a // b)


def _round_up(x, m):
    return _cdiv(x, m) * m


# --------------------------------------------------------------------------
# deterministic parameter construction (plain numpy, trace-time)
# --------------------------------------------------------------------------

def _hz_to_mel_slaney(f):
    f = np.asarray(f, dtype=np.float64)
    f_sp = 200.0 / 3.0
    mels = f / f_sp
    min_log_hz = 1000.0
    min_log_mel = min_log_hz / f_sp
    logstep = math.log(6.4) / 27.0
    return np.where(f >= min_log_hz,
                    min_log_mel + np.log(np.maximum(f, 1e-10) / min_log_hz) / logstep,
                    mels)


def _mel_to_hz_slaney(m):
    m = np.asarray(m, dtype=np.float64)
    f_sp = 200.0 / 3.0
    freqs = f_sp * m
    min_log_hz = 1000.0
    min_log_mel = min_log_hz / f_sp
    logstep = math.log(6.4) / 27.0
    return np.where(m >= min_log_mel,
                    min_log_hz * np.exp(logstep * (m - min_log_mel)),
                    freqs)


def make_mel_filterbank(sr, n_fft, n_mels, fmin, fmax):
    """librosa.filters.mel(...).T  (Slaney scale + Slaney norm). [n_freqs, n_mels]."""
    n_freqs = n_fft // 2 + 1
    fftfreqs = np.linspace(0.0, sr / 2.0, n_freqs)
    mel_pts = np.linspace(_hz_to_mel_slaney(fmin), _hz_to_mel_slaney(fmax), n_mels + 2)
    mel_f = _mel_to_hz_slaney(mel_pts)

    fdiff = np.diff(mel_f)
    ramps = mel_f[:, None] - fftfreqs[None, :]

    weights = np.zeros((n_mels, n_freqs), dtype=np.float64)
    for i in range(n_mels):
        lower = -ramps[i] / fdiff[i]
        upper = ramps[i + 2] / fdiff[i + 1]
        weights[i] = np.maximum(0.0, np.minimum(lower, upper))

    enorm = 2.0 / (mel_f[2:n_mels + 2] - mel_f[:n_mels])   # Slaney norm
    weights *= enorm[:, None]
    return weights.T.astype(np.float32)                    # [n_freqs, n_mels]


def _windowed_dft(n_fft, win_length):
    """Periodic-Hann-windowed real-DFT matrices, each [n_fft, n_fft//2 + 1]."""
    n_freqs = n_fft // 2 + 1
    n = np.arange(win_length, dtype=np.float64)
    win = 0.5 - 0.5 * np.cos(2.0 * np.pi * n / win_length)   # torch.hann_window
    window = np.zeros(n_fft, dtype=np.float64)
    left = (n_fft - win_length) // 2
    window[left:left + win_length] = win

    t = np.arange(n_fft, dtype=np.float64)
    k = np.arange(n_freqs, dtype=np.float64)
    ang = 2.0 * np.pi * np.outer(t, k) / n_fft
    cosm = (window[:, None] * np.cos(ang)).astype(np.float32)
    sinm = (window[:, None] * np.sin(ang)).astype(np.float32)
    return cosm, sinm


def make_fused_dft_basis(n_fft, win_length, frame_w):
    """[window*cos_k | window*sin_k] for k = 1..n_fft//2  ->  [frame_w, n_fft].

    Bin 0 (DC) is dropped: its mel-filterbank row is exactly zero for every
    f_min >= 0, so it never contributes to the output.  Rows beyond n_fft
    (frame padding when hop does not divide n_fft) are zero.
    """
    cosm, sinm = _windowed_dft(n_fft, win_length)
    basis = np.concatenate([cosm[:, 1:], sinm[:, 1:]], axis=1)   # (n_fft, n_fft)
    if frame_w > n_fft:
        basis = np.concatenate(
            [basis, np.zeros((frame_w - n_fft, basis.shape[1]), basis.dtype)], axis=0)
    return basis.astype(np.float32)


# --------------------------------------------------------------------------
# Pallas kernel
# --------------------------------------------------------------------------

def _logmel_kernel(main_ref, halo_ref, basis_ref, fb_ref, out_ref, frames_scr, *,
                   power, n_copies, pack, chunk_w, tile_f, half):
    """One grid step = `tile_f` STFT frames of one batch element.

    main_ref   : (tile_f, chunk_w)      f32   packed chunk rows [j*tile_f, (j+1)*tile_f)
    halo_ref   : (halo,  chunk_w)       f32   the next `halo` packed rows (frame overlap)
    basis_ref  : (frame_w, 2*half)      bf16  fused windowed DFT basis (cos|sin, DC dropped)
    fb_ref     : (half, n_mels_pad)     bf16  mel filterbank (DC row dropped, lanes padded)
    out_ref    : (n_mels_pad, tile_f)   f32   transposed log-mel output tile
    frames_scr : (tile_f, frame_w)      bf16  assembled frame tile (unused if n_copies==1)
    """
    if n_copies == 1:
        # Rows already are full frames (frames_in_hbm / wide-hop path).
        f = main_ref[...].astype(jnp.bfloat16)
    else:
        # Assemble the (tile_f, frame_w) frame tile directly from the packed
        # chunk rows; frame r = [row_r | row_{r+pack} | ... ].  Cast to bf16 in
        # the assembly stores (halves store traffic and matmul-LHS reload).
        for s in range(n_copies):
            off = s * pack
            c0 = s * chunk_w
            frames_scr[0:tile_f - off, c0:c0 + chunk_w] = (
                main_ref[off:tile_f, :].astype(jnp.bfloat16))
            if off:
                frames_scr[tile_f - off:tile_f, c0:c0 + chunk_w] = (
                    halo_ref[0:off, :].astype(jnp.bfloat16))
        f = frames_scr[...]

    # Single fused real-DFT matmul.  Lanes [0:half) = Re X_k, [half:2*half) = Im X_k
    # for k = 1..half (Nyquist included; DC dropped -- its mel weight is zero).
    y = jnp.dot(f, basis_ref[...], preferred_element_type=jnp.float32)  # (tile_f, 2*half)
    re = y[:, :half]
    im = y[:, half:]
    p = re * re + im * im                               # |X_k|^2, f32, lane-dense

    if power == 2.0:
        spec = p
    elif power == 1.0:
        spec = jnp.sqrt(p)                              # EUP slot, hidden behind MXU
    else:
        spec = jnp.power(p, power * 0.5)

    mel = jnp.dot(spec.astype(jnp.bfloat16), fb_ref[...],
                  preferred_element_type=jnp.float32)   # (tile_f, n_mels_pad)
    # Transpose in-kernel (XLU is idle) so the wrapper needs no extra HBM pass.
    out_ref[...] = jnp.transpose(jnp.log(jnp.maximum(mel, 1e-5)))


# --------------------------------------------------------------------------
# wrapper
# --------------------------------------------------------------------------

def mel_spectrogram(audio, *, sr, win_length, hop_length, n_fft,
                    f_min, f_max, n_mels, power, tile_m=1024,
                    frames_in_hbm=False):
    """audio: [B, T] float32  ->  log-mel: [B, n_mels, 1 + T // hop_length] float32."""
    assert n_fft % 2 == 0
    audio = audio.astype(jnp.float32)
    B, T = audio.shape
    hop = hop_length
    half = n_fft // 2
    n_frames = 1 + T // hop
    assert T > half, "reflect padding requires T > n_fft // 2"

    # ---- frame / chunk geometry ----------------------------------------------
    frame_w = _round_up(n_fft, hop)          # frame width seen by the kernel
    ratio = frame_w // hop                   # hop-chunks per frame
    # pack hop-chunks per row so chunk rows are lane-dense (multiple of 128).
    pack = ratio
    if not frames_in_hbm:
        for p in range(1, ratio + 1):
            if ratio % p == 0 and (p * hop) % 128 == 0:
                pack = p
                break
    n_copies = ratio // pack                 # in-kernel assembly copies per frame
    chunk_w = pack * hop

    need_halo = (n_copies - 1) * pack        # extra packed rows past the main tile
    halo = 8
    while halo < need_halo:
        halo *= 2
    assert halo >= need_halo                 # tail-truncation safety (see below)

    # Big tiles amortize the ~0.35us per-grid-step overhead.  tf must be a
    # multiple of 128 so the transposed output tile stays lane-dense.
    tf = _round_up(max(n_frames, 1), 128)
    if B == 1 and n_frames > 128:
        tf = min(tf, max(128, _round_up(_cdiv(n_frames, 2), 128)))  # >=2 steps (v7x: 2 TCs)
    tf = min(tf, max(128, _round_up(tile_m, 128)))
    assert tf % halo == 0 and tf > need_halo
    n_tiles = _cdiv(n_frames, tf)
    halo_stride = tf // halo                 # halo block index per frame tile

    # ---- trace-time weights (numpy), cast to bf16 for the MXU ----------------
    basis = jnp.asarray(make_fused_dft_basis(n_fft, win_length, frame_w),
                        dtype=jnp.bfloat16)                       # (frame_w, 2*half)
    fb_full = make_mel_filterbank(sr, n_fft, n_mels, f_min, f_max)  # (half+1, n_mels)
    # DC row is exactly zero for any f_min >= 0 (lower ramp starts at f_min).
    assert not np.any(fb_full[0]), "DC mel-filterbank row expected to be zero"
    n_mels_pad = _round_up(n_mels, 128)      # lane-dense output stores
    fb_pad = np.zeros((half, n_mels_pad), dtype=np.float32)
    fb_pad[:, :n_mels] = fb_full[1:]
    fb = jnp.asarray(fb_pad, dtype=jnp.bfloat16)

    # ---- reflect-pad (torch.stft center=True) and build packed chunk rows ----
    pad = n_fft // 2
    padded = jnp.pad(audio, ((0, 0), (pad, pad)), mode="reflect")
    n_rows = n_tiles * tf + halo             # packed rows the kernel may touch
    total_rows = n_rows + pack - 1
    need = total_rows * hop                  # >= (n_frames-1)*hop + n_fft  (halo>=need_halo)
    if need > padded.shape[1]:
        padded = jnp.pad(padded, ((0, 0), (0, need - padded.shape[1])))
    elif need < padded.shape[1]:
        padded = padded[:, :need]            # tail never read by a real frame
    resh = padded.reshape(B, total_rows, hop)
    parts = [resh[:, k:k + n_rows, :] for k in range(pack)]
    chunks = parts[0] if pack == 1 else jnp.concatenate(parts, axis=2)  # (B, n_rows, chunk_w)

    kernel = functools.partial(_logmel_kernel, power=float(power),
                               n_copies=n_copies, pack=pack, chunk_w=chunk_w,
                               tile_f=tf, half=half)

    frames_scratch = (pltpu.VMEM((tf, frame_w), jnp.bfloat16) if n_copies > 1
                      else pltpu.VMEM((8, 128), jnp.bfloat16))   # dummy when unused

    out = pl.pallas_call(
        kernel,
        out_shape=jax.ShapeDtypeStruct((B, n_mels_pad, n_tiles * tf), jnp.float32),
        grid_spec=pltpu.PrefetchScalarGridSpec(
            num_scalar_prefetch=0,
            grid=(B, n_tiles),
            in_specs=[
                pl.BlockSpec((None, tf, chunk_w), lambda b, j: (b, j, 0)),       # main rows
                pl.BlockSpec((None, halo, chunk_w),
                             lambda b, j: (b, (j + 1) * halo_stride, 0)),        # halo rows
                pl.BlockSpec((frame_w, 2 * half), lambda b, j: (0, 0)),          # DFT basis
                pl.BlockSpec((half, n_mels_pad), lambda b, j: (0, 0)),           # mel fb
            ],
            out_specs=pl.BlockSpec((None, n_mels_pad, tf), lambda b, j: (b, 0, j)),
            scratch_shapes=[frames_scratch],
        ),
        compiler_params=pltpu.CompilerParams(
            dimension_semantics=("parallel", "parallel"),
            vmem_limit_bytes=32 * 1024 * 1024,
        ),
    )(chunks, chunks, basis, fb)

    # Kernel already wrote the transposed layout; just drop padding lanes/frames.
    return out[:, :n_mels, :n_frames]        # [B, n_mels, T']


# --------------------------------------------------------------------------
# pure-JAX f32 reference (sanity check)
# --------------------------------------------------------------------------

def frame_audio(audio, n_fft, hop_length):
    B, T = audio.shape
    pad = n_fft // 2
    padded = jnp.pad(audio, ((0, 0), (pad, pad)), mode="reflect")
    n_frames = 1 + T // hop_length
    idx = np.arange(n_frames)[:, None] * hop_length + np.arange(n_fft)[None, :]
    return padded[:, idx]                                      # [B, T', n_fft]


def mel_spectrogram_ref(audio, *, sr, win_length, hop_length, n_fft,
                        f_min, f_max, n_mels, power):
    cosm, sinm = _windowed_dft(n_fft, win_length)
    fb = jnp.asarray(make_mel_filterbank(sr, n_fft, n_mels, f_min, f_max))
    frames = frame_audio(audio.astype(jnp.float32), n_fft, hop_length)
    re = jnp.einsum("btn,nf->btf", frames, jnp.asarray(cosm))
    im = jnp.einsum("btn,nf->btf", frames, jnp.asarray(sinm))
    p = re * re + im * im
    spec = p if power == 2.0 else jnp.power(p, power * 0.5)
    mel = jnp.einsum("btf,fm->btm", spec, fb)
    mel = jnp.log(jnp.maximum(mel, 1e-5))
    return jnp.transpose(mel, (0, 2, 1))


if __name__ == "__main__":
    cfg = dict(sr=16000, win_length=256, hop_length=64, n_fft=256,
               f_min=0.0, f_max=8000.0, n_mels=80, power=1.0)

    key = jax.random.PRNGKey(0)
    B, T = 2, 2048
    audio = jax.random.normal(key, (B, T), dtype=jnp.float32)

    mel_fn = jax.jit(functools.partial(mel_spectrogram, **cfg))
    mel = jax.block_until_ready(mel_fn(audio))

    n_frames = 1 + T // cfg["hop_length"]
    assert mel.shape == (B, cfg["n_mels"], n_frames), mel.shape
    assert mel.dtype == jnp.float32

    ref = jax.block_until_ready(mel_spectrogram_ref(audio, **cfg))
    mean_err = float(jnp.mean(jnp.abs(mel - ref)))
    # log-mel is ill-conditioned where a mel band has ~zero energy (kernel uses
    # bf16 MXU inputs), so also check linear-mel error with a mixed rel/abs tol.
    lin_err = float(jnp.max(jnp.abs(jnp.exp(mel) - jnp.exp(ref))
                            / (jnp.exp(ref) + 1e-2)))
    assert mean_err < 3e-2, f"mean abs log-mel err {mean_err}"
    assert lin_err < 1e-1, f"max rel linear-mel err {lin_err}"

    print("KERNEL_OK")
</pallas_src>

<mosaic_0001>
module attributes {stable_mosaic.version = 11 : i64} {
  func.func @_logmel_kernel(%arg0: i32, %arg1: i32, %arg2: memref<1x128x128xf32, #tpu.memory_space<vmem>>, %arg3: memref<1x8x128xf32, #tpu.memory_space<vmem>>, %arg4: memref<256x256xbf16, #tpu.memory_space<vmem>>, %arg5: memref<128x128xbf16, #tpu.memory_space<vmem>>, %arg6: memref<1x128x128xf32, #tpu.memory_space<vmem>>, %arg7: memref<128x256xbf16, #tpu.memory_space<vmem>>) attributes {dimension_semantics = [#tpu.dimension_semantics<parallel>, #tpu.dimension_semantics<parallel>], iteration_bounds = array<i64: 2, 1>, scalar_prefetch = 0 : i64, scratch_operands = 1 : i64, tpu.core_type = #tpu.core_type<tc>, window_params = [{transform_indices = @transform_0, window_bounds = array<i64: 1, 128, 128>}, {transform_indices = @transform_1, window_bounds = array<i64: 1, 8, 128>}, {pipeline_mode = #tpu.pipeline_mode<synchronous>, transform_indices = @transform_2, window_bounds = array<i64: 256, 256>}, {pipeline_mode = #tpu.pipeline_mode<synchronous>, transform_indices = @transform_3, window_bounds = array<i64: 128, 128>}, {transform_indices = @transform_4, window_bounds = array<i64: 1, 128, 128>}]} {
    %c0 = arith.constant 0 : index
    %c0_0 = arith.constant 0 : index
    %c0_1 = arith.constant 0 : index
    %0 = vector.load %arg2[%c0, %c0_0, %c0_1] : memref<1x128x128xf32, #tpu.memory_space<vmem>>, vector<1x128x128xf32>
    %1 = vector.shape_cast %0 : vector<1x128x128xf32> to vector<128x128xf32>
    %2 = arith.truncf %1 : vector<128x128xf32> to vector<128x128xbf16>
    %c0_2 = arith.constant 0 : index
    %c0_3 = arith.constant 0 : index
    %3 = vector.load %arg7[%c0_2, %c0_3] : memref<128x256xbf16, #tpu.memory_space<vmem>>, vector<128x128xbf16>
    tpu.vector_store %arg7[%c0_2, %c0_3], %2 {strides = array<i32>} : memref<128x256xbf16, #tpu.memory_space<vmem>>, vector<128x128xbf16>,
    %c0_4 = arith.constant 0 : index
    %c2 = arith.constant 2 : index
    %c0_5 = arith.constant 0 : index
    %4 = vector.load %arg2[%c0_4, %c2, %c0_5] : memref<1x128x128xf32, #tpu.memory_space<vmem>>, vector<1x126x128xf32>
    %5 = vector.shape_cast %4 : vector<1x126x128xf32> to vector<126x128xf32>
    %6 = arith.truncf %5 : vector<126x128xf32> to vector<126x128xbf16>
    %c0_6 = arith.constant 0 : index
    %c128 = arith.constant 128 : index
    %7 = vector.load %arg7[%c0_6, %c128] : memref<128x256xbf16, #tpu.memory_space<vmem>>, vector<126x128xbf16>
    tpu.vector_store %arg7[%c0_6, %c128], %6 {strides = array<i32>} : memref<128x256xbf16, #tpu.memory_space<vmem>>, vector<126x128xbf16>,
    %c0_7 = arith.constant 0 : index
    %c0_8 = arith.constant 0 : index
    %c0_9 = arith.constant 0 : index
    %8 = vector.load %arg3[%c0_7, %c0_8, %c0_9] : memref<1x8x128xf32, #tpu.memory_space<vmem>>, vector<1x2x128xf32>
    %9 = vector.shape_cast %8 : vector<1x2x128xf32> to vector<2x128xf32>
    %10 = arith.truncf %9 : vector<2x128xf32> to vector<2x128xbf16>
    %c126 = arith.constant 126 : index
    %c128_10 = arith.constant 128 : index
    %11 = vector.load %arg7[%c126, %c128_10] : memref<128x256xbf16, #tpu.memory_space<vmem>>, vector<2x128xbf16>
    tpu.vector_store %arg7[%c126, %c128_10], %10 {strides = array<i32>} : memref<128x256xbf16, #tpu.memory_space<vmem>>, vector<2x128xbf16>,
    %c0_11 = arith.constant 0 : index
    %c0_12 = arith.constant 0 : index
    %12 = vector.load %arg7[%c0_11, %c0_12] : memref<128x256xbf16, #tpu.memory_space<vmem>>, vector<128x256xbf16>
    %c0_13 = arith.constant 0 : index
    %c0_14 = arith.constant 0 : index
    %13 = vector.load %arg4[%c0_13, %c0_14] : memref<256x256xbf16, #tpu.memory_space<vmem>>, vector<256x256xbf16>
    %cst = arith.constant dense<0.000000e+00> : vector<128x256xf32>
    %14 = tpu.matmul %12, %13, %cst {dimension_numbers = #tpu.dot_dimension_numbers<[1], [0], [0], [1], [0, 0, 1, 1], [], []>} : vector<128x256xbf16>, vector<256x256xbf16>, vector<128x256xf32> -> vector<128x256xf32>
    %15 = vector.extract_strided_slice %14 {offsets = [0, 0], sizes = [128, 128], strides = [1, 1]} : vector<128x256xf32> to vector<128x128xf32>
    %16 = vector.extract_strided_slice %14 {offsets = [0, 128], sizes = [128, 128], strides = [1, 1]} : vector<128x256xf32> to vector<128x128xf32>
    %17 = arith.mulf %15, %15 : vector<128x128xf32>
    %18 = arith.mulf %16, %16 : vector<128x128xf32>
    %19 = arith.addf %17, %18 : vector<128x128xf32>
    %20 = math.sqrt %19 : vector<128x128xf32>
    %21 = arith.truncf %20 : vector<128x128xf32> to vector<128x128xbf16>
    %c0_15 = arith.constant 0 : index
    %c0_16 = arith.constant 0 : index
    %22 = vector.load %arg5[%c0_15, %c0_16] : memref<128x128xbf16, #tpu.memory_space<vmem>>, vector<128x128xbf16>
    %cst_17 = arith.constant dense<0.000000e+00> : vector<128x128xf32>
    %23 = tpu.matmul %21, %22, %cst_17 {dimension_numbers = #tpu.dot_dimension_numbers<[1], [0], [0], [1], [0, 0, 1, 1], [], []>} : vector<128x128xbf16>, vector<128x128xbf16>, vector<128x128xf32> -> vector<128x128xf32>
    %cst_18 = arith.constant 9.99999974E-6 : f32
    %24 = vector.broadcast %cst_18 : f32 to vector<128x128xf32>
    %25 = arith.maximumf %23, %24 : vector<128x128xf32>
    %26 = math.log %25 : vector<128x128xf32>
    %27 = tpu.transpose %26, [1, 0] : vector<128x128xf32> -> vector<128x128xf32>
    %c0_19 = arith.constant 0 : index
    %c0_20 = arith.constant 0 : index
    %c0_21 = arith.constant 0 : index
    %28 = vector.load %arg6[%c0_19, %c0_20, %c0_21] : memref<1x128x128xf32, #tpu.memory_space<vmem>>, vector<1x128x128xf32>
    %29 = vector.shape_cast %28 : vector<1x128x128xf32> to vector<128x128xf32>
    %30 = vector.shape_cast %27 : vector<128x128xf32> to vector<1x128x128xf32>
    tpu.vector_store %arg6[%c0_19, %c0_20, %c0_21], %30 {strides = array<i32>} : memref<1x128x128xf32, #tpu.memory_space<vmem>>, vector<1x128x128xf32>,
    return
  }
  func.func @transform_0(%arg0: i32, %arg1: i32) -> (i32, i32, i32) {
    %c0_i32 = arith.constant 0 : i32
    %c0_i32_0 = arith.constant 0 : i32
    return %arg0, %arg1, %c0_i32 : i32, i32, i32
  }
  func.func @transform_1(%arg0: i32, %arg1: i32) -> (i32, i32, i32) {
    %c1_i32 = arith.constant 1 : i32
    %0 = arith.addi %arg1, %c1_i32 : i32
    %c16_i32 = arith.constant 16 : i32
    %1 = arith.muli %0, %c16_i32 : i32
    %c0_i32 = arith.constant 0 : i32
    %c0_i32_0 = arith.constant 0 : i32
    return %arg0, %1, %c0_i32 : i32, i32, i32
  }
  func.func @transform_2(%arg0: i32, %arg1: i32) -> (i32, i32) {
    %c0_i32 = arith.constant 0 : i32
    %c0_i32_0 = arith.constant 0 : i32
    %c0_i32_1 = arith.constant 0 : i32
    return %c0_i32, %c0_i32_0 : i32, i32
  }
  func.func @transform_3(%arg0: i32, %arg1: i32) -> (i32, i32) {
    %c0_i32 = arith.constant 0 : i32
    %c0_i32_0 = arith.constant 0 : i32
    %c0_i32_1 = arith.constant 0 : i32
    return %c0_i32, %c0_i32_0 : i32, i32
  }
  func.func @transform_4(%arg0: i32, %arg1: i32) -> (i32, i32, i32) {
    %c0_i32 = arith.constant 0 : i32
    %c0_i32_0 = arith.constant 0 : i32
    return %arg0, %c0_i32, %arg1 : i32, i32, i32
  }
}

</mosaic_0001>

<llo_original>
// kernel: mel_spectrogram.1
$region0: #{mel_spectrogram.1}
  #allocation0 [shape = 'u32[]', space=smem, size = 0x4, offset = 0x4, fixed_abs, tag = 'smem constant byte address 0x4 - core index']
  #allocation1 [shape = 'u32[144,128]{1,0:T(1,128)}', space=vmem, size = 0x12000, scoped, tag = 'internal scratch']
  #allocation2 [shape = 'bf16[128,256]{1,0:T(16,128)(2,1)}', space=vmem, size = 0x10000, scoped, tag = 'scratch operand']
  %s0 = inlined_call_operand.vmem [shape: f32[2,136,128], index: 0, kind: input, shape index: {}, may-alias: {0,1}]
  %s1 = inlined_call_operand.vmem [shape: f32[2,136,128], index: 1, kind: input, shape index: {}, may-alias: {0,1}]
  %s2 = inlined_call_operand.vmem [shape: bf16[256,256], index: 2, kind: input, shape index: {}]
  %s3 = inlined_call_operand.vmem [shape: bf16[128,128], index: 3, kind: input, shape index: {}]
  %s4 = inlined_call_operand.vmem [shape: f32[2,128,128], index: 4, kind: output, shape index: {}]
  %s5 = sld [smem:[#allocation0]]
  $region49: #{mel_spectrogram.1} parent=0
    _
  %s7 = ssub.s32 1, %s5
  %s8 = scalar_select 0, %s7, %s5
  loop: start=0, step=1, limit=4
  $region2: #{mel_spectrogram.1} parent=0 // loop_pre_header
    _
  $region3: #{mel_spectrogram.1} parent=0 // loop_header
    %s10 = sphi 0, %s14
    %p11 = scmp.ge.s32.totalorder %s10, 4
    %s17 = sphi 0, %s29
    %s18 = sphi 0, %s25
    %s19 = sphi 0, %s17
    %s20 = sphi 0, %s18
    %s21 = sphi 0, %s19
    %s22 = sphi 0, %s20
    %s34 = sphi 0, %s36
    %s37 = sphi 0, %s34
    %s38 = sphi 0, %s37
    %s54 = sphi 0, %s38
    %s66 = sphi 0, %s68
    %s69 = sphi 0, %s66
    %s70 = sphi 0, %s69
    %s86 = sphi 0, %s70
    %s90 = sphi 0, %s90
    %s92 = sphi 0, %s90
    %s93 = sphi 0, %s92
    %s107 = sphi 0, %s93
    %s111 = sphi 0, %s111
    %s113 = sphi 0, %s111
    %s114 = sphi 0, %s113
    %s128 = sphi 0, %s114
    %s136 = sphi 0, %s138
    %s139 = sphi 0, %s136
    %s140 = sphi 0, %s139
    %s156 = sphi 0, %s140
  $region4: #{mel_spectrogram.1} parent=0 // loop_header_branch
    %13 = sbr.rel (%p11) target = $region8
  $region5: #{mel_spectrogram.1} parent=0 // loop_body
    %s15 = ssub.s32 %s10, 1
    %s16 = ssub.s32 %s10, 2
    %s23 = sadd.s32 1, %s18
    %p24 = scmp.ge.s32.totalorder %s23, 1
    %s25 = scalar_select %p24, 0, %s23
    %s26 = sadd.s32 1, %s17
    %s27 = scalar_select %p24, %s26, %s17
    %p28 = scmp.ge.s32.totalorder %s27, 2
    %s29 = scalar_select %p28, 0, %s27
    %s30 = ssub.s32 %s17, %s29
    %s31 = ssub.s32 %s18, %s25
    %s32 = sor.u32 %s30, %s31
    %p33 = scmp.eq.s32.totalorder %s32, 0
    %s35 = sadd.s32 %s34, 1
    %s36 = scalar_select %p33, %s34, %s35
    %p39 = pneg %p33
    %p40 = scmp.eq.s32.totalorder %s10, 1
    %p41 = por %p39, %p40
    %p42 = scmp.ne.s32.totalorder %s34, %s37
    %p43 = scmp.eq.s32.totalorder %s10, 0
    %p44 = por %p42, %p43
    %p45 = scmp.ne.s32.totalorder %s34, %s37
    %p46 = scmp.eq.s32.totalorder %s15, 1
    %p47 = por %p45, %p46
    %p48 = scmp.ne.s32.totalorder %s37, %s38
    %p49 = scmp.eq.s32.totalorder %s15, 0
    %p50 = por %p48, %p49
    %p51 = scmp.ne.s32.totalorder %s37, %s38
    %p52 = scmp.eq.s32.totalorder %s16, 1
    %p53 = por %p51, %p52
    %p55 = scmp.ne.s32.totalorder %s38, %s54
    %p56 = scmp.eq.s32.totalorder %s16, 0
    %p57 = por %p55, %p56
    %s58 = sadd.s32 %s18, 1
    %s59 = smul.u32 %s58, 16
    %s60 = sadd.s32 %s25, 1
    %s61 = smul.u32 %s60, 16
    %s62 = ssub.s32 %s17, %s29
    %s63 = ssub.s32 %s59, %s61
    %s64 = sor.u32 %s62, %s63
    %p65 = scmp.eq.s32.totalorder %s64, 0
    %s67 = sadd.s32 %s66, 1
    %s68 = scalar_select %p65, %s66, %s67
    %p71 = pneg %p65
    %p72 = scmp.eq.s32.totalorder %s10, 1
    %p73 = por %p71, %p72
    %p74 = scmp.ne.s32.totalorder %s66, %s69
    %p75 = scmp.eq.s32.totalorder %s10, 0
    %p76 = por %p74, %p75
    %p77 = scmp.ne.s32.totalorder %s66, %s69
    %p78 = scmp.eq.s32.totalorder %s15, 1
    %p79 = por %p77, %p78
    %p80 = scmp.ne.s32.totalorder %s69, %s70
    %p81 = scmp.eq.s32.totalorder %s15, 0
    %p82 = por %p80, %p81
    %p83 = scmp.ne.s32.totalorder %s69, %s70
    %p84 = scmp.eq.s32.totalorder %s16, 1
    %p85 = por %p83, %p84
    %p87 = scmp.ne.s32.totalorder %s70, %s86
    %p88 = scmp.eq.s32.totalorder %s16, 0
    %p89 = por %p87, %p88
    %s91 = sadd.s32 %s90, 1
    %p94 = scmp.eq.s32.totalorder %s10, 1
    %p95 = scmp.ne.s32.totalorder %s90, %s92
    %p96 = scmp.eq.s32.totalorder %s10, 0
    %p97 = por %p95, %p96
    %p98 = scmp.ne.s32.totalorder %s90, %s92
    %p99 = scmp.eq.s32.totalorder %s15, 1
    %p100 = por %p98, %p99
    %p101 = scmp.ne.s32.totalorder %s92, %s93
    %p102 = scmp.eq.s32.totalorder %s15, 0
    %p103 = por %p101, %p102
    %p104 = scmp.ne.s32.totalorder %s92, %s93
    %p105 = scmp.eq.s32.totalorder %s16, 1
    %p106 = por %p104, %p105
    %p108 = scmp.ne.s32.totalorder %s93, %s107
    %p109 = scmp.eq.s32.totalorder %s16, 0
    %p110 = por %p108, %p109
    %s112 = sadd.s32 %s111, 1
    %p115 = scmp.eq.s32.totalorder %s10, 1
    %p116 = scmp.ne.s32.totalorder %s111, %s113
    %p117 = scmp.eq.s32.totalorder %s10, 0
    %p118 = por %p116, %p117
    %p119 = scmp.ne.s32.totalorder %s111, %s113
    %p120 = scmp.eq.s32.totalorder %s15, 1
    %p121 = por %p119, %p120
    %p122 = scmp.ne.s32.totalorder %s113, %s114
    %p123 = scmp.eq.s32.totalorder %s15, 0
    %p124 = por %p122, %p123
    %p125 = scmp.ne.s32.totalorder %s113, %s114
    %p126 = scmp.eq.s32.totalorder %s16, 1
    %p127 = por %p125, %p126
    %p129 = scmp.ne.s32.totalorder %s114, %s128
    %p130 = scmp.eq.s32.totalorder %s16, 0
    %p131 = por %p129, %p130
    %s132 = ssub.s32 %s17, %s29
    %s133 = ssub.s32 %s18, %s25
    %s134 = sor.u32 %s132, %s133
    %p135 = scmp.eq.s32.totalorder %s134, 0
    %s137 = sadd.s32 %s136, 1
    %s138 = scalar_select %p135, %s136, %s137
    %p141 = pneg %p135
    %p142 = scmp.eq.s32.totalorder %s10, 1
    %p143 = por %p141, %p142
    %p144 = scmp.ne.s32.totalorder %s136, %s139
    %p145 = scmp.eq.s32.totalorder %s10, 0
    %p146 = por %p144, %p145
    %p147 = scmp.ne.s32.totalorder %s136, %s139
    %p148 = scmp.eq.s32.totalorder %s15, 1
    %p149 = por %p147, %p148
    %p150 = scmp.ne.s32.totalorder %s139, %s140
    %p151 = scmp.eq.s32.totalorder %s15, 0
    %p152 = por %p150, %p151
    %p153 = scmp.ne.s32.totalorder %s139, %s140
    %p154 = scmp.eq.s32.totalorder %s16, 1
    %p155 = por %p153, %p154
    %p157 = scmp.ne.s32.totalorder %s140, %s156
    %p158 = scmp.eq.s32.totalorder %s16, 0
    %p159 = por %p157, %p158
    %p160 = scmp.le.s32.totalorder 1, %s10
    %p161 = scmp.lt.s32.totalorder %s10, 3
    %p162 = pnand %p160, %p161
    %p163 = pneg %p162
    // Predicated region
    $region9: #{mel_spectrogram.1} parent=5 // pred_check
      _
    $region10: #{mel_spectrogram.1} parent=5 // pred_check_branch
      %165 = sbr.rel (%p162) target = $region12
    $region11: #{mel_spectrogram.1} parent=5 // pred_region
      %s166 = ssub.s32 %s10, 1
      // Predicated region
      $region13: #{mel_spectrogram.1} parent=11 // pred_check
        %p167 = pneg %p103
      $region14: #{mel_spectrogram.1} parent=11 // pred_check_branch
        %169 = sbr.rel (%p167) target = $region16
      $region15: #{mel_spectrogram.1} parent=11 // pred_region
        _
      $region16: #{mel_spectrogram.1} parent=11 // pred_fallthru
        _
      // Predicated region
      $region17: #{mel_spectrogram.1} parent=11 // pred_check
        %p170 = pneg %p124
      $region18: #{mel_spectrogram.1} parent=11 // pred_check_branch
        %172 = sbr.rel (%p170) target = $region20
      $region19: #{mel_spectrogram.1} parent=11 // pred_region
        _
      $region20: #{mel_spectrogram.1} parent=11 // pred_fallthru
        _
    $region12: #{mel_spectrogram.1} parent=5 // pred_fallthru
      _
    %p173 = scmp.lt.s32.totalorder %s10, 2
    // Predicated region
    $region21: #{mel_spectrogram.1} parent=5 // pred_check
      %p174 = pneg %p173
    $region22: #{mel_spectrogram.1} parent=5 // pred_check_branch
      %176 = sbr.rel (%p174) target = $region24
    $region23: #{mel_spectrogram.1} parent=5 // pred_region
      // Predicated region
      $region25: #{mel_spectrogram.1} parent=23 // pred_check
        %p177 = pneg %p44
      $region26: #{mel_spectrogram.1} parent=23 // pred_check_branch
        %179 = sbr.rel (%p177) target = $region28
      $region27: #{mel_spectrogram.1} parent=23 // pred_region
        %s180 = smul.u32 16, %s18
        %s181 = ssub.s32 17, %s180
        %p182 = scmp.lt.s32.totalorder %s181, 16
        %s183 = scalar_select %p182, %s181, 16
        %s184 = smul.u32 128, %s183
        %p185 = scmp.lt.s32.totalorder %s17, 1
        %s186 = scalar_select %p185, %s17, 1
        %p187 = scmp.lt.s32.totalorder %s180, 16
        %s188 = scalar_select %p187, %s180, 16
        %s189 = smul.addr %s186, 17
        %s190 = sadd.s32 %s188, %s189
        %s191 = smul.addr %s190, 8
        %s192 = scalar_lea.vmem %s0, %s191
        %s193 = smul.u32 16, %s18
        %s194 = ssub.s32 17, %s193
        %p195 = scmp.lt.s32.totalorder %s194, 16
        %s196 = scalar_select %p195, %s194, 16
        %s197 = smul.u32 128, %s196
      $region28: #{mel_spectrogram.1} parent=23 // pred_fallthru
        _
      // Predicated region
      $region29: #{mel_spectrogram.1} parent=23 // pred_check
        %p198 = pneg %p76
      $region30: #{mel_spectrogram.1} parent=23 // pred_check_branch
        %200 = sbr.rel (%p198) target = $region32
      $region31: #{mel_spectrogram.1} parent=23 // pred_region
        %s201 = sadd.s32 %s18, 1
        %s202 = smul.u32 %s201, 16
        %p203 = scmp.lt.s32.totalorder %s17, 1
        %s204 = scalar_select %p203, %s17, 1
        %p205 = scmp.lt.s32.totalorder %s202, 16
        %s206 = scalar_select %p205, %s202, 16
        %s207 = smul.addr %s204, 17
        %s208 = sadd.s32 %s206, %s207
        %s209 = smul.addr %s208, 8
        %s210 = scalar_lea.vmem %s1, %s209
        %s211 = sadd.s32 %s18, 1
        %s212 = smul.u32 %s211, 16
      $region32: #{mel_spectrogram.1} parent=23 // pred_fallthru
        _
    $region24: #{mel_spectrogram.1} parent=5 // pred_fallthru
      _
    %p213 = scmp.le.s32.totalorder 1, %s10
    %p214 = scmp.lt.s32.totalorder %s10, 3
    %p215 = pnand %p213, %p214
    %p216 = pneg %p215
    // Predicated region
    $region33: #{mel_spectrogram.1} parent=5 // pred_check
      _
    $region34: #{mel_spectrogram.1} parent=5 // pred_check_branch
      %218 = sbr.rel (%p215) target = $region36
    $region35: #{mel_spectrogram.1} parent=5 // pred_region
      %s219 = ssub.s32 %s10, 1
      %s220 = smul.u32 16, %s20
      %s221 = ssub.s32 17, %s220
      %p222 = scmp.lt.s32.totalorder %s221, 16
      %s223 = scalar_select %p222, %s221, 16
      %s224 = smul.u32 128, %s223
      %p225 = scmp.lt.s32.totalorder %s19, 1
      %s226 = scalar_select %p225, %s19, 1
      %p227 = scmp.lt.s32.totalorder %s220, 16
      %s228 = scalar_select %p227, %s220, 16
      %s229 = smul.addr %s226, 17
      %s230 = sadd.s32 %s228, %s229
      %s231 = smul.addr %s230, 8
      %s232 = scalar_lea.vmem %s0, %s231
      %p233 = pneg %p50
      %p234 = pneg %p47
      %s235 = sadd.s32 %s20, 1
      %s236 = smul.u32 %s235, 16
      %p237 = scmp.lt.s32.totalorder %s19, 1
      %s238 = scalar_select %p237, %s19, 1
      %p239 = scmp.lt.s32.totalorder %s236, 16
      %s240 = scalar_select %p239, %s236, 16
      %s241 = smul.addr %s238, 17
      %s242 = sadd.s32 %s240, %s241
      %s243 = smul.addr %s242, 8
      %s244 = scalar_lea.vmem %s1, %s243
      %p245 = pneg %p82
      %p246 = pneg %p79
      %p247 = pneg %p103
      %p248 = pneg %p100
      %p249 = pneg %p124
      %p250 = pneg %p121
      %p251 = pneg %p152
      %p252 = pneg %p149
      %p253 = scmp.lt.s32.totalorder %s19, 1
      %s254 = scalar_select %p253, %s19, 1
      %p255 = scmp.lt.s32.totalorder %s20, 0
      %s256 = scalar_select %p255, %s20, 0
      %s257 = smul.addr %s254, 16
      %s258 = sadd.s32 %s256, %s257
      %s259 = smul.addr %s258, 8
      %s260 = scalar_lea.vmem %s4, %s259
      %s261 = smul.u32 16, %s20
      %s262 = ssub.s32 17, %s261
      %p263 = scmp.lt.s32.totalorder %s262, 16
      %s264 = scalar_select %p263, %s262, 16
      %s265 = smul.u32 128, %s264
      %p266 = scmp.lt.s32.totalorder %s19, 1
      %s267 = scalar_select %p266, %s19, 1
      %p268 = scmp.lt.s32.totalorder %s261, 16
      %s269 = scalar_select %p268, %s261, 16
      %s270 = smul.addr %s267, 17
      %s271 = sadd.s32 %s269, %s270
      %s272 = smul.addr %s271, 8
      %s273 = scalar_lea.vmem %s0, %s272
      %s274 = smul.u32 16, %s20
      %s275 = ssub.s32 17, %s274
      %p276 = scmp.lt.s32.totalorder %s275, 16
      %s277 = scalar_select %p276, %s275, 16
      %s278 = smul.u32 128, %s277
      %s279 = sadd.s32 %s20, 1
      %s280 = smul.u32 %s279, 16
      %p281 = scmp.lt.s32.totalorder %s19, 1
      %s282 = scalar_select %p281, %s19, 1
      %p283 = scmp.lt.s32.totalorder %s280, 16
      %s284 = scalar_select %p283, %s280, 16
      %s285 = smul.addr %s282, 17
      %s286 = sadd.s32 %s284, %s285
      %s287 = smul.addr %s286, 8
      %s288 = scalar_lea.vmem %s1, %s287
      %s289 = sadd.s32 %s20, 1
      %s290 = smul.u32 %s289, 16
      %p291 = scmp.lt.s32.totalorder %s19, 1
      %s292 = scalar_select %p291, %s19, 1
      %p293 = scmp.lt.s32.totalorder %s20, 0
      %s294 = scalar_select %p293, %s20, 0
      %s295 = smul.addr %s292, 16
      %s296 = sadd.s32 %s294, %s295
      %s297 = smul.addr %s296, 8
      %s298 = scalar_lea.vmem %s4, %s297
      %v300 = vld [vmem:[%s273] sm:$0xff]
      %v301 = vld [vmem:[%s273 + $0x8] sm:$0xff]
      %v302 = vld [vmem:[%s273 + $0x10] sm:$0xff]
      %v303 = vld [vmem:[%s273 + $0x18] sm:$0xff]
      %v304 = vld [vmem:[%s273 + $0x20] sm:$0xff]
      %v305 = vld [vmem:[%s273 + $0x28] sm:$0xff]
      %v306 = vld [vmem:[%s273 + $0x30] sm:$0xff]
      %v307 = vld [vmem:[%s273 + $0x38] sm:$0xff]
      %v308 = vld [vmem:[%s273 + $0x40] sm:$0xff]
      %v309 = vld [vmem:[%s273 + $0x48] sm:$0xff]
      %v310 = vld [vmem:[%s273 + $0x50] sm:$0xff]
      %v311 = vld [vmem:[%s273 + $0x58] sm:$0xff]
      %v312 = vld [vmem:[%s273 + $0x60] sm:$0xff]
      %v313 = vld [vmem:[%s273 + $0x68] sm:$0xff]
      %v314 = vld [vmem:[%s273 + $0x70] sm:$0xff]
      %v315 = vld [vmem:[%s273 + $0x78] sm:$0xff]
      %v316 = vpack.c.bf16 %v301, %v300
      %v317 = vpack.c.bf16 %v303, %v302
      %v318 = vpack.c.bf16 %v305, %v304
      %v319 = vpack.c.bf16 %v307, %v306
      %v320 = vpack.c.bf16 %v309, %v308
      %v321 = vpack.c.bf16 %v311, %v310
      %v322 = vpack.c.bf16 %v313, %v312
      %v323 = vpack.c.bf16 %v315, %v314
      %324 = vst [vmem:[#allocation2] sm:$0xff] %v316
      %325 = vst [vmem:[#allocation2 + $0x10] sm:$0xff] %v317
      %326 = vst [vmem:[#allocation2 + $0x20] sm:$0xff] %v318
      %327 = vst [vmem:[#allocation2 + $0x30] sm:$0xff] %v319
      %328 = vst [vmem:[#allocation2 + $0x40] sm:$0xff] %v320
      %329 = vst [vmem:[#allocation2 + $0x50] sm:$0xff] %v321
      %330 = vst [vmem:[#allocation2 + $0x60] sm:$0xff] %v322
      %331 = vst [vmem:[#allocation2 + $0x70] sm:$0xff] %v323
      %v332 = vld [vmem:[%s273 + $0x2] sm:$0xff]
      %v333 = vld [vmem:[%s273 + $0xa] sm:$0xff]
      %v334 = vld [vmem:[%s273 + $0x12] sm:$0xff]
      %v335 = vld [vmem:[%s273 + $0x1a] sm:$0xff]
      %v336 = vld [vmem:[%s273 + $0x22] sm:$0xff]
      %v337 = vld [vmem:[%s273 + $0x2a] sm:$0xff]
      %v338 = vld [vmem:[%s273 + $0x32] sm:$0xff]
      %v339 = vld [vmem:[%s273 + $0x3a] sm:$0xff]
      %v340 = vld [vmem:[%s273 + $0x42] sm:$0xff]
      %v341 = vld [vmem:[%s273 + $0x4a] sm:$0xff]
      %v342 = vld [vmem:[%s273 + $0x52] sm:$0xff]
      %v343 = vld [vmem:[%s273 + $0x5a] sm:$0xff]
      %v344 = vld [vmem:[%s273 + $0x62] sm:$0xff]
      %v345 = vld [vmem:[%s273 + $0x6a] sm:$0xff]
      %v346 = vld [vmem:[%s273 + $0x72] sm:$0xff]
      %v347 = vld [vmem:[%s273 + $0x7a] sm:$0x3f]
      %v348 = vpack.c.bf16 %v333, %v332
      %v349 = vpack.c.bf16 %v335, %v334
      %v350 = vpack.c.bf16 %v337, %v336
      %v351 = vpack.c.bf16 %v339, %v338
      %v352 = vpack.c.bf16 %v341, %v340
      %v353 = vpack.c.bf16 %v343, %v342
      %v354 = vpack.c.bf16 %v345, %v344
      %v355 = vpack.c.bf16 %v347, %v346
      %356 = vst [vmem:[#allocation2 + $0x8] sm:$0xff] %v348
      %357 = vst [vmem:[#allocation2 + $0x18] sm:$0xff] %v349
      %358 = vst [vmem:[#allocation2 + $0x28] sm:$0xff] %v350
      %359 = vst [vmem:[#allocation2 + $0x38] sm:$0xff] %v351
      %360 = vst [vmem:[#allocation2 + $0x48] sm:$0xff] %v352
      %361 = vst [vmem:[#allocation2 + $0x58] sm:$0xff] %v353
      %362 = vst [vmem:[#allocation2 + $0x68] sm:$0xff] %v354
      %363 = vst [vmem:[#allocation2 + $0x78] sm:$0x7f] %v355
      %v364 = vld [vmem:[%s288] sm:$0x3]
      %v365 = vpack.c.bf16 %v364, %v364
      %v367 = vrot.slane %v365, 1
      %369 = vst [vmem:[#allocation2 + $0x78] sm:$0x80] %v367
      %v370 = vld [vmem:[#allocation2] sm:$0xff]
      %v371 = vld [vmem:[#allocation2 + $0x8] sm:$0xff]
      %v372 = vld [vmem:[#allocation2 + $0x10] sm:$0xff]
      %v373 = vld [vmem:[#allocation2 + $0x18] sm:$0xff]
      %v374 = vld [vmem:[#allocation2 + $0x20] sm:$0xff]
      %v375 = vld [vmem:[#allocation2 + $0x28] sm:$0xff]
      %v376 = vld [vmem:[#allocation2 + $0x30] sm:$0xff]
      %v377 = vld [vmem:[#allocation2 + $0x38] sm:$0xff]
      %v378 = vld [vmem:[#allocation2 + $0x40] sm:$0xff]
      %v379 = vld [vmem:[#allocation2 + $0x48] sm:$0xff]
      %v380 = vld [vmem:[#allocation2 + $0x50] sm:$0xff]
      %v381 = vld [vmem:[#allocation2 + $0x58] sm:$0xff]
      %v382 = vld [vmem:[#allocation2 + $0x60] sm:$0xff]
      %v383 = vld [vmem:[#allocation2 + $0x68] sm:$0xff]
      %v384 = vld [vmem:[#allocation2 + $0x70] sm:$0xff]
      %v385 = vld [vmem:[#allocation2 + $0x78] sm:$0xff]
      %v386 = vld [vmem:[%s2] sm:$0xff]
      %v387 = vld [vmem:[%s2 + $0x8] sm:$0xff]
      %v388 = vld [vmem:[%s2 + $0x10] sm:$0xff]
      %v389 = vld [vmem:[%s2 + $0x18] sm:$0xff]
      %v390 = vld [vmem:[%s2 + $0x20] sm:$0xff]
      %v391 = vld [vmem:[%s2 + $0x28] sm:$0xff]
      %v392 = vld [vmem:[%s2 + $0x30] sm:$0xff]
      %v393 = vld [vmem:[%s2 + $0x38] sm:$0xff]
      %v394 = vld [vmem:[%s2 + $0x40] sm:$0xff]
      %v395 = vld [vmem:[%s2 + $0x48] sm:$0xff]
      %v396 = vld [vmem:[%s2 + $0x50] sm:$0xff]
      %v397 = vld [vmem:[%s2 + $0x58] sm:$0xff]
      %v398 = vld [vmem:[%s2 + $0x60] sm:$0xff]
      %v399 = vld [vmem:[%s2 + $0x68] sm:$0xff]
      %v400 = vld [vmem:[%s2 + $0x70] sm:$0xff]
      %v401 = vld [vmem:[%s2 + $0x78] sm:$0xff]
      %v402 = vld [vmem:[%s2 + $0x80] sm:$0xff]
      %v403 = vld [vmem:[%s2 + $0x88] sm:$0xff]
      %v404 = vld [vmem:[%s2 + $0x90] sm:$0xff]
      %v405 = vld [vmem:[%s2 + $0x98] sm:$0xff]
      %v406 = vld [vmem:[%s2 + $0xa0] sm:$0xff]
      %v407 = vld [vmem:[%s2 + $0xa8] sm:$0xff]
      %v408 = vld [vmem:[%s2 + $0xb0] sm:$0xff]
      %v409 = vld [vmem:[%s2 + $0xb8] sm:$0xff]
      %v410 = vld [vmem:[%s2 + $0xc0] sm:$0xff]
      %v411 = vld [vmem:[%s2 + $0xc8] sm:$0xff]
      %v412 = vld [vmem:[%s2 + $0xd0] sm:$0xff]
      %v413 = vld [vmem:[%s2 + $0xd8] sm:$0xff]
      %v414 = vld [vmem:[%s2 + $0xe0] sm:$0xff]
      %v415 = vld [vmem:[%s2 + $0xe8] sm:$0xff]
      %v416 = vld [vmem:[%s2 + $0xf0] sm:$0xff]
      %v417 = vld [vmem:[%s2 + $0xf8] sm:$0xff]
      %v450 = vunpack.c.l.b16 %v386
      %v451 = vunpack.c.h.b16 %v386
      %v452 = vunpack.c.l.b16 %v387
      %v453 = vunpack.c.h.b16 %v387
      %v454 = vunpack.c.l.b16 %v388
      %v455 = vunpack.c.h.b16 %v388
      %v456 = vunpack.c.l.b16 %v389
      %v457 = vunpack.c.h.b16 %v389
      %v458 = vunpack.c.l.b16 %v390
      %v459 = vunpack.c.h.b16 %v390
      %v460 = vunpack.c.l.b16 %v391
      %v461 = vunpack.c.h.b16 %v391
      %v462 = vunpack.c.l.b16 %v392
      %v463 = vunpack.c.h.b16 %v392
      %v464 = vunpack.c.l.b16 %v393
      %v465 = vunpack.c.h.b16 %v393
      %v466 = vunpack.c.l.b16 %v394
      %v467 = vunpack.c.h.b16 %v394
      %v468 = vunpack.c.l.b16 %v395
      %v469 = vunpack.c.h.b16 %v395
      %v470 = vunpack.c.l.b16 %v396
      %v471 = vunpack.c.h.b16 %v396
      %v472 = vunpack.c.l.b16 %v397
      %v473 = vunpack.c.h.b16 %v397
      %v474 = vunpack.c.l.b16 %v398
      %v475 = vunpack.c.h.b16 %v398
      %v476 = vunpack.c.l.b16 %v399
      %v477 = vunpack.c.h.b16 %v399
      %v478 = vunpack.c.l.b16 %v400
      %v479 = vunpack.c.h.b16 %v400
      %v480 = vunpack.c.l.b16 %v401
      %v481 = vunpack.c.h.b16 %v401
      %v482 = vunpack.c.l.b16 %v402
      %v483 = vunpack.c.h.b16 %v402
      %v484 = vunpack.c.l.b16 %v403
      %v485 = vunpack.c.h.b16 %v403
      %v486 = vunpack.c.l.b16 %v404
      %v487 = vunpack.c.h.b16 %v404
      %v488 = vunpack.c.l.b16 %v405
      %v489 = vunpack.c.h.b16 %v405
      %v490 = vunpack.c.l.b16 %v406
      %v491 = vunpack.c.h.b16 %v406
      %v492 = vunpack.c.l.b16 %v407
      %v493 = vunpack.c.h.b16 %v407
      %v494 = vunpack.c.l.b16 %v408
      %v495 = vunpack.c.h.b16 %v408
      %v496 = vunpack.c.l.b16 %v409
      %v497 = vunpack.c.h.b16 %v409
      %v498 = vunpack.c.l.b16 %v410
      %v499 = vunpack.c.h.b16 %v410
      %v500 = vunpack.c.l.b16 %v411
      %v501 = vunpack.c.h.b16 %v411
      %v502 = vunpack.c.l.b16 %v412
      %v503 = vunpack.c.h.b16 %v412
      %v504 = vunpack.c.l.b16 %v413
      %v505 = vunpack.c.h.b16 %v413
      %v506 = vunpack.c.l.b16 %v414
      %v507 = vunpack.c.h.b16 %v414
      %v508 = vunpack.c.l.b16 %v415
      %v509 = vunpack.c.h.b16 %v415
      %v510 = vunpack.c.l.b16 %v416
      %v511 = vunpack.c.h.b16 %v416
      %v512 = vunpack.c.l.b16 %v417
      %v513 = vunpack.c.h.b16 %v417
      %v514 = vpack.c.b16 %v452, %v450
      %v515 = vpack.c.b16 %v453, %v451
      %v516 = vpack.c.b16 %v456, %v454
      %v517 = vpack.c.b16 %v457, %v455
      %v518 = vpack.c.b16 %v460, %v458
      %v519 = vpack.c.b16 %v461, %v459
      %v520 = vpack.c.b16 %v464, %v462
      %v521 = vpack.c.b16 %v465, %v463
      %v522 = vpack.c.b16 %v468, %v466
      %v523 = vpack.c.b16 %v469, %v467
      %v524 = vpack.c.b16 %v472, %v470
      %v525 = vpack.c.b16 %v473, %v471
      %v526 = vpack.c.b16 %v476, %v474
      %v527 = vpack.c.b16 %v477, %v475
      %v528 = vpack.c.b16 %v480, %v478
      %v529 = vpack.c.b16 %v481, %v479
      %v530 = vpack.c.b16 %v484, %v482
      %v531 = vpack.c.b16 %v485, %v483
      %v532 = vpack.c.b16 %v488, %v486
      %v533 = vpack.c.b16 %v489, %v487
      %v534 = vpack.c.b16 %v492, %v490
      %v535 = vpack.c.b16 %v493, %v491
      %v536 = vpack.c.b16 %v496, %v494
      %v537 = vpack.c.b16 %v497, %v495
      %v538 = vpack.c.b16 %v500, %v498
      %v539 = vpack.c.b16 %v501, %v499
      %v540 = vpack.c.b16 %v504, %v502
      %v541 = vpack.c.b16 %v505, %v503
      %v542 = vpack.c.b16 %v508, %v506
      %v543 = vpack.c.b16 %v509, %v507
      %v544 = vpack.c.b16 %v512, %v510
      %v545 = vpack.c.b16 %v513, %v511
      %578 = vmatprep.subr.bf16.mxu0 %v515
      %579 = vmatpush1.bf16.msra.mxu0 %v514
      %580 = vmatprep.subr.bf16.mxu0 %v517
      %581 = vmatpush1.bf16.msra.mxu0 %v516
      %582 = vmatprep.subr.bf16.mxu0 %v519
      %583 = vmatpush1.bf16.msra.mxu0 %v518
      %584 = vmatprep.subr.bf16.mxu0 %v521
      %585 = vmatpush1.bf16.msra.mxu0 %v520
      %586 = vmatprep.subr.bf16.mxu0 %v523
      %587 = vmatpush1.bf16.msra.mxu0 %v522
      %588 = vmatprep.subr.bf16.mxu0 %v525
      %589 = vmatpush1.bf16.msra.mxu0 %v524
      %590 = vmatprep.subr.bf16.mxu0 %v527
      %591 = vmatpush1.bf16.msra.mxu0 %v526
      %592 = vmatprep.subr.bf16.mxu0 %v529
      %593 = vmatpush1.bf16.msra.mxu0 %v528
      %594 = vmatprep.subr.bf16.mxu0 %v531
      %595 = vmatpush1.bf16.msra.mxu0 %v530
      %596 = vmatprep.subr.bf16.mxu0 %v533
      %597 = vmatpush1.bf16.msra.mxu0 %v532
      %598 = vmatprep.subr.bf16.mxu0 %v535
      %599 = vmatpush1.bf16.msra.mxu0 %v534
      %600 = vmatprep.subr.bf16.mxu0 %v537
      %601 = vmatpush1.bf16.msra.mxu0 %v536
      %602 = vmatprep.subr.bf16.mxu0 %v539
      %603 = vmatpush1.bf16.msra.mxu0 %v538
      %604 = vmatprep.subr.bf16.mxu0 %v541
      %605 = vmatpush1.bf16.msra.mxu0 %v540
      %606 = vmatprep.subr.bf16.mxu0 %v543
      %607 = vmatpush1.bf16.msra.mxu0 %v542
      %608 = vmatprep.subr.bf16.mxu0 %v545
      %609 = vmatpush1.bf16.msra.mxu0 %v544
      %610 = vmatprep.mubr.bf16.mxu0 %v371
      %611 = vmatmul.mubr.bf16.gmra.mrb[0].mxu0 %v370
      %v612 = vpop.f32.mrb[0].mxu0
      %v613 = vadd.f32 0.0, %v612
      %v614 = vpop.f32.mrb[0].mxu0
      %v615 = vadd.f32 0.0, %v614
      %v616 = vpop.f32.mrb[0].mxu0
      %v617 = vadd.f32 0.0, %v616
      %v618 = vpop.f32.mrb[0].mxu0
      %v619 = vadd.f32 0.0, %v618
      %620 = vmatprep.mubr.bf16.mxu0 %v373
      %621 = vmatmul.mubr.bf16.gmra.mrb[0].mxu0 %v372
      %v622 = vpop.f32.mrb[0].mxu0
      %v623 = vadd.f32 0.0, %v622
      %v624 = vpop.f32.mrb[0].mxu0
      %v625 = vadd.f32 0.0, %v624
      %v626 = vpop.f32.mrb[0].mxu0
      %v627 = vadd.f32 0.0, %v626
      %v628 = vpop.f32.mrb[0].mxu0
      %v629 = vadd.f32 0.0, %v628
      %630 = vmatprep.mubr.bf16.mxu0 %v375
      %631 = vmatmul.mubr.bf16.gmra.mrb[0].mxu0 %v374
      %v632 = vpop.f32.mrb[0].mxu0
      %v633 = vadd.f32 0.0, %v632
      %v634 = vpop.f32.mrb[0].mxu0
      %v635 = vadd.f32 0.0, %v634
      %v636 = vpop.f32.mrb[0].mxu0
      %v637 = vadd.f32 0.0, %v636
      %v638 = vpop.f32.mrb[0].mxu0
      %v639 = vadd.f32 0.0, %v638
      %640 = vmatprep.mubr.bf16.mxu0 %v377
      %641 = vmatmul.mubr.bf16.gmra.mrb[0].mxu0 %v376
      %v642 = vpop.f32.mrb[0].mxu0
      %v643 = vadd.f32 0.0, %v642
      %v644 = vpop.f32.mrb[0].mxu0
      %v645 = vadd.f32 0.0, %v644
      %v646 = vpop.f32.mrb[0].mxu0
      %v647 = vadd.f32 0.0, %v646
      %v648 = vpop.f32.mrb[0].mxu0
      %v649 = vadd.f32 0.0, %v648
      %650 = vmatprep.mubr.bf16.mxu0 %v379
      %651 = vmatmul.mubr.bf16.gmra.mrb[0].mxu0 %v378
      %v652 = vpop.f32.mrb[0].mxu0
      %v653 = vadd.f32 0.0, %v652
      %v654 = vpop.f32.mrb[0].mxu0
      %v655 = vadd.f32 0.0, %v654
      %v656 = vpop.f32.mrb[0].mxu0
      %v657 = vadd.f32 0.0, %v656
      %v658 = vpop.f32.mrb[0].mxu0
      %v659 = vadd.f32 0.0, %v658
      %660 = vmatprep.mubr.bf16.mxu0 %v381
      %661 = vmatmul.mubr.bf16.gmra.mrb[0].mxu0 %v380
      %v662 = vpop.f32.mrb[0].mxu0
      %v663 = vadd.f32 0.0, %v662
      %v664 = vpop.f32.mrb[0].mxu0
      %v665 = vadd.f32 0.0, %v664
      %v666 = vpop.f32.mrb[0].mxu0
      %v667 = vadd.f32 0.0, %v666
      %v668 = vpop.f32.mrb[0].mxu0
      %v669 = vadd.f32 0.0, %v668
      %670 = vmatprep.mubr.bf16.mxu0 %v383
      %671 = vmatmul.mubr.bf16.gmra.mrb[0].mxu0 %v382
      %v672 = vpop.f32.mrb[0].mxu0
      %v673 = vadd.f32 0.0, %v672
      %v674 = vpop.f32.mrb[0].mxu0
      %v675 = vadd.f32 0.0, %v674
      %v676 = vpop.f32.mrb[0].mxu0
      %v677 = vadd.f32 0.0, %v676
      %v678 = vpop.f32.mrb[0].mxu0
      %v679 = vadd.f32 0.0, %v678
      %680 = vmatprep.mubr.bf16.mxu0 %v385
      %681 = vmatmul.mubr.bf16.gmra.mrb[0].mxu0 %v384
      %v682 = vpop.f32.mrb[0].mxu0
      %v683 = vadd.f32 0.0, %v682
      %v684 = vpop.f32.mrb[0].mxu0
      %v685 = vadd.f32 0.0, %v684
      %v686 = vpop.f32.mrb[0].mxu0
      %v687 = vadd.f32 0.0, %v686
      %v688 = vpop.f32.mrb[0].mxu0
      %v689 = vadd.f32 0.0, %v688
      %690 = vdwg.mxu0
      %v691 = vmul.f32 %v613, %v613
      %v692 = vmul.f32 %v617, %v617
      %v693 = vmul.f32 %v623, %v623
      %v694 = vmul.f32 %v627, %v627
      %v695 = vmul.f32 %v633, %v633
      %v696 = vmul.f32 %v637, %v637
      %v697 = vmul.f32 %v643, %v643
      %v698 = vmul.f32 %v647, %v647
      %v699 = vmul.f32 %v653, %v653
      %v700 = vmul.f32 %v657, %v657
      %v701 = vmul.f32 %v663, %v663
      %v702 = vmul.f32 %v667, %v667
      %v703 = vmul.f32 %v673, %v673
      %v704 = vmul.f32 %v677, %v677
      %v705 = vmul.f32 %v683, %v683
      %v706 = vmul.f32 %v687, %v687
      %v707 = vmul.f32 %v615, %v615
      %v708 = vmul.f32 %v619, %v619
      %v709 = vmul.f32 %v625, %v625
      %v710 = vmul.f32 %v629, %v629
      %v711 = vmul.f32 %v635, %v635
      %v712 = vmul.f32 %v639, %v639
      %v713 = vmul.f32 %v645, %v645
      %v714 = vmul.f32 %v649, %v649
      %v715 = vmul.f32 %v655, %v655
      %v716 = vmul.f32 %v659, %v659
      %v717 = vmul.f32 %v665, %v665
      %v718 = vmul.f32 %v669, %v669
      %v719 = vmul.f32 %v675, %v675
      %v720 = vmul.f32 %v679, %v679
      %v721 = vmul.f32 %v685, %v685
      %v722 = vmul.f32 %v689, %v689
      %v723 = vadd.f32 %v691, %v707
      %v724 = vadd.f32 %v692, %v708
      %v725 = vadd.f32 %v693, %v709
      %v726 = vadd.f32 %v694, %v710
      %v727 = vadd.f32 %v695, %v711
      %v728 = vadd.f32 %v696, %v712
      %v729 = vadd.f32 %v697, %v713
      %v730 = vadd.f32 %v698, %v714
      %v731 = vadd.f32 %v699, %v715
      %v732 = vadd.f32 %v700, %v716
      %v733 = vadd.f32 %v701, %v717
      %v734 = vadd.f32 %v702, %v718
      %v735 = vadd.f32 %v703, %v719
      %v736 = vadd.f32 %v704, %v720
      %v737 = vadd.f32 %v705, %v721
      %v738 = vadd.f32 %v706, %v722
      %v739 = vrsqrt.pop %v723
      %v740 = vmul.f32 %v723, %v739
      %vm741 = vcmp.eq.f32.partialorder %v723, inf
      %v742 = vsel %vm741, %v723, %v740
      %vm743 = vcmp.eq.f32.partialorder %v723, 0.0
      %v744 = vand.u32 %v723, 2147483648
      %v745 = vsel %vm743, %v744, %v742
      %v746 = vrsqrt.pop %v724
      %v747 = vmul.f32 %v724, %v746
      %vm748 = vcmp.eq.f32.partialorder %v724, inf
      %v749 = vsel %vm748, %v724, %v747
      %vm750 = vcmp.eq.f32.partialorder %v724, 0.0
      %v751 = vand.u32 %v724, 2147483648
      %v752 = vsel %vm750, %v751, %v749
      %v753 = vrsqrt.pop %v725
      %v754 = vmul.f32 %v725, %v753
      %vm755 = vcmp.eq.f32.partialorder %v725, inf
      %v756 = vsel %vm755, %v725, %v754
      %vm757 = vcmp.eq.f32.partialorder %v725, 0.0
      %v758 = vand.u32 %v725, 2147483648
      %v759 = vsel %vm757, %v758, %v756
      %v760 = vrsqrt.pop %v726
      %v761 = vmul.f32 %v726, %v760
      %vm762 = vcmp.eq.f32.partialorder %v726, inf
      %v763 = vsel %vm762, %v726, %v761
      %vm764 = vcmp.eq.f32.partialorder %v726, 0.0
      %v765 = vand.u32 %v726, 2147483648
      %v766 = vsel %vm764, %v765, %v763
      %v767 = vrsqrt.pop %v727
      %v768 = vmul.f32 %v727, %v767
      %vm769 = vcmp.eq.f32.partialorder %v727, inf
      %v770 = vsel %vm769, %v727, %v768
      %vm771 = vcmp.eq.f32.partialorder %v727, 0.0
      %v772 = vand.u32 %v727, 2147483648
      %v773 = vsel %vm771, %v772, %v770
      %v774 = vrsqrt.pop %v728
      %v775 = vmul.f32 %v728, %v774
      %vm776 = vcmp.eq.f32.partialorder %v728, inf
      %v777 = vsel %vm776, %v728, %v775
      %vm778 = vcmp.eq.f32.partialorder %v728, 0.0
      %v779 = vand.u32 %v728, 2147483648
      %v780 = vsel %vm778, %v779, %v777
      %v781 = vrsqrt.pop %v729
      %v782 = vmul.f32 %v729, %v781
      %vm783 = vcmp.eq.f32.partialorder %v729, inf
      %v784 = vsel %vm783, %v729, %v782
      %vm785 = vcmp.eq.f32.partialorder %v729, 0.0
      %v786 = vand.u32 %v729, 2147483648
      %v787 = vsel %vm785, %v786, %v784
      %v788 = vrsqrt.pop %v730
      %v789 = vmul.f32 %v730, %v788
      %vm790 = vcmp.eq.f32.partialorder %v730, inf
      %v791 = vsel %vm790, %v730, %v789
      %vm792 = vcmp.eq.f32.partialorder %v730, 0.0
      %v793 = vand.u32 %v730, 2147483648
      %v794 = vsel %vm792, %v793, %v791
      %v795 = vrsqrt.pop %v731
      %v796 = vmul.f32 %v731, %v795
      %vm797 = vcmp.eq.f32.partialorder %v731, inf
      %v798 = vsel %vm797, %v731, %v796
      %vm799 = vcmp.eq.f32.partialorder %v731, 0.0
      %v800 = vand.u32 %v731, 2147483648
      %v801 = vsel %vm799, %v800, %v798
      %v802 = vrsqrt.pop %v732
      %v803 = vmul.f32 %v732, %v802
      %vm804 = vcmp.eq.f32.partialorder %v732, inf
      %v805 = vsel %vm804, %v732, %v803
      %vm806 = vcmp.eq.f32.partialorder %v732, 0.0
      %v807 = vand.u32 %v732, 2147483648
      %v808 = vsel %vm806, %v807, %v805
      %v809 = vrsqrt.pop %v733
      %v810 = vmul.f32 %v733, %v809
      %vm811 = vcmp.eq.f32.partialorder %v733, inf
      %v812 = vsel %vm811, %v733, %v810
      %vm813 = vcmp.eq.f32.partialorder %v733, 0.0
      %v814 = vand.u32 %v733, 2147483648
      %v815 = vsel %vm813, %v814, %v812
      %v816 = vrsqrt.pop %v734
      %v817 = vmul.f32 %v734, %v816
      %vm818 = vcmp.eq.f32.partialorder %v734, inf
      %v819 = vsel %vm818, %v734, %v817
      %vm820 = vcmp.eq.f32.partialorder %v734, 0.0
      %v821 = vand.u32 %v734, 2147483648
      %v822 = vsel %vm820, %v821, %v819
      %v823 = vrsqrt.pop %v735
      %v824 = vmul.f32 %v735, %v823
      %vm825 = vcmp.eq.f32.partialorder %v735, inf
      %v826 = vsel %vm825, %v735, %v824
      %vm827 = vcmp.eq.f32.partialorder %v735, 0.0
      %v828 = vand.u32 %v735, 2147483648
      %v829 = vsel %vm827, %v828, %v826
      %v830 = vrsqrt.pop %v736
      %v831 = vmul.f32 %v736, %v830
      %vm832 = vcmp.eq.f32.partialorder %v736, inf
      %v833 = vsel %vm832, %v736, %v831
      %vm834 = vcmp.eq.f32.partialorder %v736, 0.0
      %v835 = vand.u32 %v736, 2147483648
      %v836 = vsel %vm834, %v835, %v833
      %v837 = vrsqrt.pop %v737
      %v838 = vmul.f32 %v737, %v837
      %vm839 = vcmp.eq.f32.partialorder %v737, inf
      %v840 = vsel %vm839, %v737, %v838
      %vm841 = vcmp.eq.f32.partialorder %v737, 0.0
      %v842 = vand.u32 %v737, 2147483648
      %v843 = vsel %vm841, %v842, %v840
      %v844 = vrsqrt.pop %v738
      %v845 = vmul.f32 %v738, %v844
      %vm846 = vcmp.eq.f32.partialorder %v738, inf
      %v847 = vsel %vm846, %v738, %v845
      %vm848 = vcmp.eq.f32.partialorder %v738, 0.0
      %v849 = vand.u32 %v738, 2147483648
      %v850 = vsel %vm848, %v849, %v847
      %v851 = vpack.c.bf16 %v752, %v745
      %v852 = vpack.c.bf16 %v766, %v759
      %v853 = vpack.c.bf16 %v780, %v773
      %v854 = vpack.c.bf16 %v794, %v787
      %v855 = vpack.c.bf16 %v808, %v801
      %v856 = vpack.c.bf16 %v822, %v815
      %v857 = vpack.c.bf16 %v836, %v829
      %v858 = vpack.c.bf16 %v850, %v843
      %v859 = vld [vmem:[%s3] sm:$0xf]
      %v860 = vld [vmem:[%s3 + $0x4] sm:$0xf]
      %v861 = vld [vmem:[%s3 + $0x8] sm:$0xf]
      %v862 = vld [vmem:[%s3 + $0xc] sm:$0xf]
      %v863 = vld [vmem:[%s3 + $0x10] sm:$0xf]
      %v864 = vld [vmem:[%s3 + $0x14] sm:$0xf]
      %v865 = vld [vmem:[%s3 + $0x18] sm:$0xf]
      %v866 = vld [vmem:[%s3 + $0x1c] sm:$0xf]
      %v867 = vld [vmem:[%s3 + $0x20] sm:$0xf]
      %v868 = vld [vmem:[%s3 + $0x24] sm:$0xf]
      %v869 = vld [vmem:[%s3 + $0x28] sm:$0xf]
      %v870 = vld [vmem:[%s3 + $0x2c] sm:$0xf]
      %v871 = vld [vmem:[%s3 + $0x30] sm:$0xf]
      %v872 = vld [vmem:[%s3 + $0x34] sm:$0xf]
      %v873 = vld [vmem:[%s3 + $0x38] sm:$0xf]
      %v874 = vld [vmem:[%s3 + $0x3c] sm:$0xf]
      %v891 = vunpack.c.l.b16 %v859
      %v892 = vunpack.c.l.b16 %v860
      %v893 = vunpack.c.l.b16 %v861
      %v894 = vunpack.c.l.b16 %v862
      %v895 = vunpack.c.l.b16 %v863
      %v896 = vunpack.c.l.b16 %v864
      %v897 = vunpack.c.l.b16 %v865
      %v898 = vunpack.c.l.b16 %v866
      %v899 = vunpack.c.l.b16 %v867
      %v900 = vunpack.c.l.b16 %v868
      %v901 = vunpack.c.l.b16 %v869
      %v902 = vunpack.c.l.b16 %v870
      %v903 = vunpack.c.l.b16 %v871
      %v904 = vunpack.c.l.b16 %v872
      %v905 = vunpack.c.l.b16 %v873
      %v906 = vunpack.c.l.b16 %v874
      %v907 = vpack.c.b16 %v892, %v891
      %v908 = vpack.c.b16 %v894, %v893
      %v909 = vpack.c.b16 %v896, %v895
      %v910 = vpack.c.b16 %v898, %v897
      %v911 = vpack.c.b16 %v900, %v899
      %v912 = vpack.c.b16 %v902, %v901
      %v913 = vpack.c.b16 %v904, %v903
      %v914 = vpack.c.b16 %v906, %v905
      %923 = vmatprep.subr.bf16.mxu0 0
      %924 = vmatpush1.bf16.msra.mxu0 %v907
      %925 = vmatprep.subr.bf16.mxu0 0
      %926 = vmatpush1.bf16.msra.mxu0 %v908
      %927 = vmatprep.subr.bf16.mxu0 0
      %928 = vmatpush1.bf16.msra.mxu0 %v909
      %929 = vmatprep.subr.bf16.mxu0 0
      %930 = vmatpush1.bf16.msra.mxu0 %v910
      %931 = vmatprep.subr.bf16.mxu0 0
      %932 = vmatpush1.bf16.msra.mxu0 %v911
      %933 = vmatprep.subr.bf16.mxu0 0
      %934 = vmatpush1.bf16.msra.mxu0 %v912
      %935 = vmatprep.subr.bf16.mxu0 0
      %936 = vmatpush1.bf16.msra.mxu0 %v913
      %937 = vmatprep.subr.bf16.mxu0 0
      %938 = vmatpush1.bf16.msra.mxu0 %v914
      %939 = vmatprep.subr.bf16.mxu0 0
      %940 = vmatpush1.bf16.msra.mxu0 0
      %941 = vmatprep.subr.bf16.mxu0 0
      %942 = vmatpush1.bf16.msra.mxu0 0
      %943 = vmatprep.subr.bf16.mxu0 0
      %944 = vmatpush1.bf16.msra.mxu0 0
      %945 = vmatprep.subr.bf16.mxu0 0
      %946 = vmatpush1.bf16.msra.mxu0 0
      %947 = vmatprep.subr.bf16.mxu0 0
      %948 = vmatpush1.bf16.msra.mxu0 0
      %949 = vmatprep.subr.bf16.mxu0 0
      %950 = vmatpush1.bf16.msra.mxu0 0
      %951 = vmatprep.subr.bf16.mxu0 0
      %952 = vmatpush1.bf16.msra.mxu0 0
      %953 = vmatprep.subr.bf16.mxu0 0
      %954 = vmatpush1.bf16.msra.mxu0 0
      %955 = vmatprep.mubr.bf16.mxu0 0
      %956 = vmatmul.mubr.bf16.gmra.mrb[0].mxu0 %v851
      %v957 = vpop.f32.mrb[0].mxu0
      %v958 = vadd.f32 0.0, %v957
      %v959 = vpop.f32.mrb[0].mxu0
      %v960 = vpop.f32.mrb[0].mxu0
      %v961 = vadd.f32 0.0, %v960
      %v962 = vpop.f32.mrb[0].mxu0
      %963 = vmatprep.mubr.bf16.mxu0 0
      %964 = vmatmul.mubr.bf16.gmra.mrb[0].mxu0 %v852
      %v965 = vpop.f32.mrb[0].mxu0
      %v966 = vadd.f32 0.0, %v965
      %v967 = vpop.f32.mrb[0].mxu0
      %v968 = vpop.f32.mrb[0].mxu0
      %v969 = vadd.f32 0.0, %v968
      %v970 = vpop.f32.mrb[0].mxu0
      %971 = vmatprep.mubr.bf16.mxu0 0
      %972 = vmatmul.mubr.bf16.gmra.mrb[0].mxu0 %v853
      %v973 = vpop.f32.mrb[0].mxu0
      %v974 = vadd.f32 0.0, %v973
      %v975 = vpop.f32.mrb[0].mxu0
      %v976 = vpop.f32.mrb[0].mxu0
      %v977 = vadd.f32 0.0, %v976
      %v978 = vpop.f32.mrb[0].mxu0
      %979 = vmatprep.mubr.bf16.mxu0 0
      %980 = vmatmul.mubr.bf16.gmra.mrb[0].mxu0 %v854
      %v981 = vpop.f32.mrb[0].mxu0
      %v982 = vadd.f32 0.0, %v981
      %v983 = vpop.f32.mrb[0].mxu0
      %v984 = vpop.f32.mrb[0].mxu0
      %v985 = vadd.f32 0.0, %v984
      %v986 = vpop.f32.mrb[0].mxu0
      %987 = vmatprep.mubr.bf16.mxu0 0
      %988 = vmatmul.mubr.bf16.gmra.mrb[0].mxu0 %v855
      %v989 = vpop.f32.mrb[0].mxu0
      %v990 = vadd.f32 0.0, %v989
      %v991 = vpop.f32.mrb[0].mxu0
      %v992 = vpop.f32.mrb[0].mxu0
      %v993 = vadd.f32 0.0, %v992
      %v994 = vpop.f32.mrb[0].mxu0
      %995 = vmatprep.mubr.bf16.mxu0 0
      %996 = vmatmul.mubr.bf16.gmra.mrb[0].mxu0 %v856
      %v997 = vpop.f32.mrb[0].mxu0
      %v998 = vadd.f32 0.0, %v997
      %v999 = vpop.f32.mrb[0].mxu0
      %v1000 = vpop.f32.mrb[0].mxu0
      %v1001 = vadd.f32 0.0, %v1000
      %v1002 = vpop.f32.mrb[0].mxu0
      %1003 = vmatprep.mubr.bf16.mxu0 0
      %1004 = vmatmul.mubr.bf16.gmra.mrb[0].mxu0 %v857
      %v1005 = vpop.f32.mrb[0].mxu0
      %v1006 = vadd.f32 0.0, %v1005
      %v1007 = vpop.f32.mrb[0].mxu0
      %v1008 = vpop.f32.mrb[0].mxu0
      %v1009 = vadd.f32 0.0, %v1008
      %v1010 = vpop.f32.mrb[0].mxu0
      %1011 = vmatprep.mubr.bf16.mxu0 0
      %1012 = vmatmul.mubr.bf16.gmra.mrb[0].mxu0 %v858
      %v1013 = vpop.f32.mrb[0].mxu0
      %v1014 = vadd.f32 0.0, %v1013
      %v1015 = vpop.f32.mrb[0].mxu0
      %v1016 = vpop.f32.mrb[0].mxu0
      %v1017 = vadd.f32 0.0, %v1016
      %v1018 = vpop.f32.mrb[0].mxu0
      %1019 = vdwg.mxu0
      %v1020 = vmax.f32 %v958, 1e-05
      %v1021 = vmax.f32 %v961, 1e-05
      %v1022 = vmax.f32 %v966, 1e-05
      %v1023 = vmax.f32 %v969, 1e-05
      %v1024 = vmax.f32 %v974, 1e-05
      %v1025 = vmax.f32 %v977, 1e-05
      %v1026 = vmax.f32 %v982, 1e-05
      %v1027 = vmax.f32 %v985, 1e-05
      %v1028 = vmax.f32 %v990, 1e-05
      %v1029 = vmax.f32 %v993, 1e-05
      %v1030 = vmax.f32 %v998, 1e-05
      %v1031 = vmax.f32 %v1001, 1e-05
      %v1032 = vmax.f32 %v1006, 1e-05
      %v1033 = vmax.f32 %v1009, 1e-05
      %v1034 = vmax.f32 %v1014, 1e-05
      %v1035 = vmax.f32 %v1017, 1e-05
      %v1036 = vlog2.pop %v1020
      %v1037 = vmul.f32 %v1036, 0.6931472
      %v1038 = vlog2.pop %v1021
      %v1039 = vmul.f32 %v1038, 0.6931472
      %v1040 = vlog2.pop %v1022
      %v1041 = vmul.f32 %v1040, 0.6931472
      %v1042 = vlog2.pop %v1023
      %v1043 = vmul.f32 %v1042, 0.6931472
      %v1044 = vlog2.pop %v1024
      %v1045 = vmul.f32 %v1044, 0.6931472
      %v1046 = vlog2.pop %v1025
      %v1047 = vmul.f32 %v1046, 0.6931472
      %v1048 = vlog2.pop %v1026
      %v1049 = vmul.f32 %v1048, 0.6931472
      %v1050 = vlog2.pop %v1027
      %v1051 = vmul.f32 %v1050, 0.6931472
      %v1052 = vlog2.pop %v1028
      %v1053 = vmul.f32 %v1052, 0.6931472
      %v1054 = vlog2.pop %v1029
      %v1055 = vmul.f32 %v1054, 0.6931472
      %v1056 = vlog2.pop %v1030
      %v1057 = vmul.f32 %v1056, 0.6931472
      %v1058 = vlog2.pop %v1031
      %v1059 = vmul.f32 %v1058, 0.6931472
      %v1060 = vlog2.pop %v1032
      %v1061 = vmul.f32 %v1060, 0.6931472
      %v1062 = vlog2.pop %v1033
      %v1063 = vmul.f32 %v1062, 0.6931472
      %v1064 = vlog2.pop %v1034
      %v1065 = vmul.f32 %v1064, 0.6931472
      %v1066 = vlog2.pop %v1035
      %v1067 = vmul.f32 %v1066, 0.6931472
      %1068 = vxpose.xlu0.b32.start [1/16] %v1037, 128
      %1069 = vxpose.xlu0.b32.cont [2/16] %v1039, 128
      %1070 = vxpose.xlu0.b32.cont [3/16] %v1041, 128
      %1071 = vxpose.xlu0.b32.cont [4/16] %v1043, 128
      %1072 = vxpose.xlu0.b32.cont [5/16] %v1045, 128
      %1073 = vxpose.xlu0.b32.cont [6/16] %v1047, 128
      %1074 = vxpose.xlu0.b32.cont [7/16] %v1049, 128
      %1075 = vxpose.xlu0.b32.cont [8/16] %v1051, 128
      %1076 = vxpose.xlu0.b32.cont [9/16] %v1053, 128
      %1077 = vxpose.xlu0.b32.cont [10/16] %v1055, 128
      %1078 = vxpose.xlu0.b32.cont [11/16] %v1057, 128
      %1079 = vxpose.xlu0.b32.cont [12/16] %v1059, 128
      %1080 = vxpose.xlu0.b32.cont [13/16] %v1061, 128
      %1081 = vxpose.xlu0.b32.cont [14/16] %v1063, 128
      %1082 = vxpose.xlu0.b32.cont [15/16] %v1065, 128
      %1083 = vxpose.xlu0.b32.end [16/16] %v1067, 128
      %v1084 = vpop.trf.xlu0
      %v1085 = vpop.trf.xlu0
      %v1086 = vpop.trf.xlu0
      %v1087 = vpop.trf.xlu0
      %v1088 = vpop.trf.xlu0
      %v1089 = vpop.trf.xlu0
      %v1090 = vpop.trf.xlu0
      %v1091 = vpop.trf.xlu0
      %v1092 = vpop.trf.xlu0
      %v1093 = vpop.trf.xlu0
      %v1094 = vpop.trf.xlu0
      %v1095 = vpop.trf.xlu0
      %v1096 = vpop.trf.xlu0
      %v1097 = vpop.trf.xlu0
      %v1098 = vpop.trf.xlu0
      %v1099 = vpop.trf.xlu0
      %1100 = vst [vmem:[%s298] sm:$0xff] %v1084
      %1101 = vst [vmem:[%s298 + $0x8] sm:$0xff] %v1085
      %1102 = vst [vmem:[%s298 + $0x10] sm:$0xff] %v1086
      %1103 = vst [vmem:[%s298 + $0x18] sm:$0xff] %v1087
      %1104 = vst [vmem:[%s298 + $0x20] sm:$0xff] %v1088
      %1105 = vst [vmem:[%s298 + $0x28] sm:$0xff] %v1089
      %1106 = vst [vmem:[%s298 + $0x30] sm:$0xff] %v1090
      %1107 = vst [vmem:[%s298 + $0x38] sm:$0xff] %v1091
      %1108 = vst [vmem:[%s298 + $0x40] sm:$0xff] %v1092
      %1109 = vst [vmem:[%s298 + $0x48] sm:$0xff] %v1093
      %1110 = vst [vmem:[%s298 + $0x50] sm:$0xff] %v1094
      %1111 = vst [vmem:[%s298 + $0x58] sm:$0xff] %v1095
      %1112 = vst [vmem:[%s298 + $0x60] sm:$0xff] %v1096
      %1113 = vst [vmem:[%s298 + $0x68] sm:$0xff] %v1097
      %1114 = vst [vmem:[%s298 + $0x70] sm:$0xff] %v1098
      %1115 = vst [vmem:[%s298 + $0x78] sm:$0xff] %v1099
      %p1116 = scmp.lt.s32.totalorder %s19, 1
      %s1117 = scalar_select %p1116, %s19, 1
      %p1118 = scmp.lt.s32.totalorder %s20, 0
      %s1119 = scalar_select %p1118, %s20, 0
      %s1120 = smul.addr %s1117, 16
      %s1121 = sadd.s32 %s1119, %s1120
      %s1122 = smul.addr %s1121, 8
      %s1123 = scalar_lea.vmem %s4, %s1122
      // Predicated region
      $region37: #{mel_spectrogram.1} parent=35 // pred_check
        %p1124 = pneg %p149
      $region38: #{mel_spectrogram.1} parent=35 // pred_check_branch
        %1126 = sbr.rel (%p1124) target = $region40
      $region39: #{mel_spectrogram.1} parent=35 // pred_region
        _
      $region40: #{mel_spectrogram.1} parent=35 // pred_fallthru
        _
    $region36: #{mel_spectrogram.1} parent=5 // pred_fallthru
      _
    %p1127 = scmp.le.s32.totalorder 2, %s10
    // Predicated region
    $region41: #{mel_spectrogram.1} parent=5 // pred_check
      %p1128 = pneg %p1127
    $region42: #{mel_spectrogram.1} parent=5 // pred_check_branch
      %1130 = sbr.rel (%p1128) target = $region44
    $region43: #{mel_spectrogram.1} parent=5 // pred_region
      %s1131 = ssub.s32 %s10, 2
      // Predicated region
      $region45: #{mel_spectrogram.1} parent=43 // pred_check
        %p1132 = pneg %p155
      $region46: #{mel_spectrogram.1} parent=43 // pred_check_branch
        %1134 = sbr.rel (%p1132) target = $region48
      $region47: #{mel_spectrogram.1} parent=43 // pred_region
        %p1135 = scmp.lt.s32.totalorder %s21, 1
        %s1136 = scalar_select %p1135, %s21, 1
        %p1137 = scmp.lt.s32.totalorder %s22, 0
        %s1138 = scalar_select %p1137, %s22, 0
        %s1139 = smul.addr %s1136, 16
        %s1140 = sadd.s32 %s1138, %s1139
        %s1141 = smul.addr %s1140, 8
        %s1142 = scalar_lea.vmem %s4, %s1141
      $region48: #{mel_spectrogram.1} parent=43 // pred_fallthru
        _
    $region44: #{mel_spectrogram.1} parent=5 // pred_fallthru
      _
  $region6: #{mel_spectrogram.1} parent=0 // loop_footer
    %s14 = sadd.s32 1, %s10
  $region7: #{mel_spectrogram.1} parent=0 // loop_footer_branch
    %9 = sbr.rel target = $region3
  $region8: #{mel_spectrogram.1} parent=0 // loop_exit
    _

</llo_original>
